<compile_context>
chip_gen: v7x
topology: tpu7x:2x2x1
jax: 0.10.0
libtpu: 0.0.40
codegen_flags: <defaults>
</compile_context>

<pallas_src>
import functools

import jax
import jax.numpy as jnp
import numpy as np
from jax.experimental import pallas as pl
from jax.experimental.pallas import tpu as pltpu


# ----------------------------------------------------------------------------
# helpers
# ----------------------------------------------------------------------------
def _pick_tile(total, target):
    """Largest lane-friendly tile <= target that divides total (or total itself)."""
    if total <= target:
        return total
    start = target - (target % 128) if target >= 128 else target
    for t in range(start, 0, -128):
        if t > 0 and total % t == 0:
            return t
    return total


# ----------------------------------------------------------------------------
# Kernel 1: fused bias MLP  (Linear(dim_s,1024) -> ReLU -> Linear(1024, L*L))
# grid = (num_heads, n_tiles_of_L2); hidden activation lives only in VMEM scratch.
# ----------------------------------------------------------------------------
def _bias_mlp_kernel(sf_ref, wb1_ref, bb1_ref, wb2_ref, bb2_ref, out_ref, hid_ref):
    @pl.when(pl.program_id(1) == 0)
    def _():
        hid_ref[...] = jnp.maximum(
            jnp.dot(sf_ref[...], wb1_ref[0], preferred_element_type=jnp.float32)
            + bb1_ref[0],
            0.0,
        )

    out_ref[0] = (
        jnp.dot(hid_ref[...], wb2_ref[0], preferred_element_type=jnp.float32)
        + bb2_ref[0]
    ).astype(out_ref.dtype)


def bias_mlp(sf, wb1, bb1, wb2, bb2):
    nh, dim_s, hdim = wb1.shape
    b = sf.shape[0]
    l2 = wb2.shape[-1]
    tn = _pick_tile(l2, 512)
    grid = (nh, l2 // tn)
    return pl.pallas_call(
        _bias_mlp_kernel,
        out_shape=jax.ShapeDtypeStruct((nh, b, l2), jnp.float32),
        grid=grid,
        in_specs=[
            pl.BlockSpec((b, dim_s), lambda h, n: (0, 0)),
            pl.BlockSpec((1, dim_s, hdim), lambda h, n: (h, 0, 0)),
            pl.BlockSpec((1, 1, hdim), lambda h, n: (h, 0, 0)),
            pl.BlockSpec((1, hdim, tn), lambda h, n: (h, 0, n)),
            pl.BlockSpec((1, 1, tn), lambda h, n: (h, 0, n)),
        ],
        out_specs=pl.BlockSpec((1, b, tn), lambda h, n: (h, 0, n)),
        scratch_shapes=[pltpu.VMEM((b, hdim), jnp.float32)],
        compiler_params=pltpu.CompilerParams(
            dimension_semantics=("parallel", "arbitrary")
        ),
    )(sf, wb1, bb1, wb2, bb2)
    # TODO(synk): for very large seq_len also K-tile the 1024-wide contraction with an
    # f32 accumulator; not needed at these shapes.


# ----------------------------------------------------------------------------
# Kernel 2: fused attention (+ output projection + TV-norm), grid = (batch, heads)
# ----------------------------------------------------------------------------
def _fused_attn_kernel(
    q_in_ref, k_in_ref, v_in_ref, bias_ref,
    wq_ref, bq_ref, wk_ref, bk_ref, wv_ref, bv_ref,
    wo_ref, bo_ref,
    out_ref, norm_ref,
    acc_ref, nacc_ref,
    *, inv_scale,
):
    h = pl.program_id(1)
    nh = pl.num_programs(1)

    @pl.when(h == 0)
    def _():
        acc_ref[...] = jnp.zeros_like(acc_ref)
        nacc_ref[...] = jnp.zeros_like(nacc_ref)

    # per-head Q / K / V projections (stay in VMEM / vregs, never round-trip HBM)
    q = jnp.dot(q_in_ref[0], wq_ref[0], preferred_element_type=jnp.float32) + bq_ref[0]
    k = jnp.dot(k_in_ref[0], wk_ref[0], preferred_element_type=jnp.float32) + bk_ref[0]
    v = jnp.dot(v_in_ref[0], wv_ref[0], preferred_element_type=jnp.float32) + bv_ref[0]
    bias = bias_ref[0, 0]                      # (L, L)

    # scores: contract last dims directly (no .T -> no XLU transpose of K)
    s = jax.lax.dot_general(
        q, k, dimension_numbers=(((1,), (1,)), ((), ())),
        preferred_element_type=jnp.float32,
    ) * inv_scale

    m = jnp.max(s, axis=-1, keepdims=True)
    e = jnp.exp(s - m)
    p = e * pl.reciprocal(jnp.sum(e, axis=-1, keepdims=True), approx=True)
    att = p + bias
    head_out = jnp.dot(att, v, preferred_element_type=jnp.float32)   # (L, dim_k)

    # fold the final Linear(num_heads*dim_k -> dim_model) into the head loop:
    # hidden @ Wo == sum_h head_out_h @ Wo[h]
    acc_ref[...] += jnp.dot(head_out, wo_ref[0], preferred_element_type=jnp.float32)

    # L1 total-variation of the bias map, accumulated over heads in a VMEM scalar
    L = bias.shape[0]
    rows = jax.lax.broadcasted_iota(jnp.int32, (L, L), 0)
    cols = jax.lax.broadcasted_iota(jnp.int32, (L, L), 1)
    dr = jnp.abs(bias - pltpu.roll(bias, shift=1, axis=0))
    dc = jnp.abs(bias - pltpu.roll(bias, shift=1, axis=1))
    nacc_ref[...] += (
        jnp.sum(jnp.where(rows >= 1, dr, 0.0))
        + jnp.sum(jnp.where(cols >= 1, dc, 0.0))
    )

    @pl.when(h == nh - 1)
    def _():
        out_ref[0] = (acc_ref[...] + bo_ref[...]).astype(out_ref.dtype)
        norm_ref[0] = nacc_ref[...]


def fused_attention(query, key, value, bias_all, wq, bq, wk, bk, wv, bv, wo_r, bo):
    b, l, d = query.shape
    nh, _, dq = wq.shape
    dk = wv.shape[-1]
    dm = wo_r.shape[-1]
    inv_scale = 1.0 / (float(dq) ** 0.5)

    kernel = functools.partial(_fused_attn_kernel, inv_scale=inv_scale)
    out, norm = pl.pallas_call(
        kernel,
        out_shape=(
            jax.ShapeDtypeStruct((b, l, dm), query.dtype),
            jax.ShapeDtypeStruct((b, 1, 1), jnp.float32),
        ),
        grid=(b, nh),
        in_specs=[
            pl.BlockSpec((1, l, d), lambda bi, h: (bi, 0, 0)),
            pl.BlockSpec((1, l, d), lambda bi, h: (bi, 0, 0)),
            pl.BlockSpec((1, l, d), lambda bi, h: (bi, 0, 0)),
            pl.BlockSpec((1, 1, l, l), lambda bi, h: (h, bi, 0, 0)),
            pl.BlockSpec((1, d, dq), lambda bi, h: (h, 0, 0)),
            pl.BlockSpec((1, 1, dq), lambda bi, h: (h, 0, 0)),
            pl.BlockSpec((1, d, dq), lambda bi, h: (h, 0, 0)),
            pl.BlockSpec((1, 1, dq), lambda bi, h: (h, 0, 0)),
            pl.BlockSpec((1, d, dk), lambda bi, h: (h, 0, 0)),
            pl.BlockSpec((1, 1, dk), lambda bi, h: (h, 0, 0)),
            pl.BlockSpec((1, dk, dm), lambda bi, h: (h, 0, 0)),
            pl.BlockSpec((1, dm), lambda bi, h: (0, 0)),
        ],
        out_specs=(
            pl.BlockSpec((1, l, dm), lambda bi, h: (bi, 0, 0)),
            pl.BlockSpec((1, 1, 1), lambda bi, h: (bi, 0, 0)),
        ),
        scratch_shapes=[
            pltpu.VMEM((l, dm), jnp.float32),
            pltpu.VMEM((1, 1), jnp.float32),
        ],
        compiler_params=pltpu.CompilerParams(
            dimension_semantics=("parallel", "arbitrary")
        ),
    )(query, key, value, bias_all, wq, bq, wk, bk, wv, bv, wo_r, bo)
    return out, norm
    # TODO(synk): for realistic seq_len (L >~ 1k, esp. v7x's 64 MiB VMEM), tile the L
    # axes flash-style (split softmax@V + bias@V) instead of materializing (L,L) tiles.


# ----------------------------------------------------------------------------
# Model wrapper (glue in plain JAX): 2 pallas_calls total + one tiny jnp.sum
# ----------------------------------------------------------------------------
def multi_head_attention_bias(query, key, value, sf, params):
    """Implements MultiHeadAttentionBias.forward with pos=None, use_cls=False."""
    nh = params["wq"].shape[0]
    b, l, _ = query.shape

    bias_flat = bias_mlp(sf, params["wb1"], params["bb1"], params["wb2"], params["bb2"])
    bias_all = bias_flat.reshape(nh, b, l, l)   # free row-major metadata reshape

    out, norm_partial = fused_attention(
        query, key, value, bias_all,
        params["wq"], params["bq"], params["wk"], params["bk"],
        params["wv"], params["bv"], params["wo_r"], params["bo"],
    )
    return out, jnp.sum(norm_partial)
    # TODO(synk): pos is not None path (b1/q_cpe/k_cpe positional bias), add_mode != 0
    # and use_cls=True branches are dead under the module defaults and not implemented.


# ----------------------------------------------------------------------------
# Deterministic parameter init (weights stacked per-head for the fused kernels)
# ----------------------------------------------------------------------------
def init_params(key, num_heads, dim_in, dim_model, dim_q, dim_k, dim_s, seq_len):
    def lin(key, shape_w, shape_b, scale=0.05):
        kw, kb = jax.random.split(key)
        w = jax.random.uniform(kw, shape_w, jnp.float32, -scale, scale)
        b = jax.random.uniform(kb, shape_b, jnp.float32, -scale, scale)
        return w, b

    key, k1, k2, k3, k4, k5, ko = jax.random.split(key, 7)
    wq, bq = lin(k1, (num_heads, dim_in, dim_q), (num_heads, 1, dim_q))
    wk, bk = lin(k2, (num_heads, dim_in, dim_k), (num_heads, 1, dim_k))
    wv, bv = lin(k3, (num_heads, dim_in, dim_k), (num_heads, 1, dim_k))
    wb1, bb1 = lin(k4, (num_heads, dim_s, 1024), (num_heads, 1, 1024))
    wb2, bb2 = lin(k5, (num_heads, 1024, seq_len * seq_len),
                   (num_heads, 1, seq_len * seq_len))
    wo, bo = lin(ko, (num_heads * dim_k, dim_model), (1, dim_model))
    return dict(
        wq=wq, bq=bq, wk=wk, bk=bk, wv=wv, bv=bv,
        wb1=wb1, bb1=bb1, wb2=wb2, bb2=bb2,
        wo=wo, wo_r=wo.reshape(num_heads, dim_k, dim_model), bo=bo,
    )


# ----------------------------------------------------------------------------
# Pure-JAX reference (for a sanity check)
# ----------------------------------------------------------------------------
def reference(query, key, value, sf, params):
    b, l, d = query.shape
    nh = params["wq"].shape[0]
    outs, norm = [], 0.0
    for h in range(nh):
        q = (query.reshape(b * l, d) @ params["wq"][h] + params["bq"][h]).reshape(b, l, -1)
        k = (key.reshape(b * l, d) @ params["wk"][h] + params["bk"][h]).reshape(b, l, -1)
        v = (value.reshape(b * l, d) @ params["wv"][h] + params["bv"][h]).reshape(b, l, -1)
        hid = jnp.maximum(sf @ params["wb1"][h] + params["bb1"][h], 0.0)
        bias = (hid @ params["wb2"][h] + params["bb2"][h]).reshape(b, l, l)
        temp = jnp.einsum("bld,bmd->blm", q, k)
        scale = q.shape[-1] ** 0.5
        soft = jax.nn.softmax(temp / scale, axis=-1) + bias
        outs.append(jnp.einsum("blm,bmd->bld", soft, v))
        norm = norm + (jnp.sum(jnp.abs(bias[:, 1:, :] - bias[:, :-1, :]))
                       + jnp.sum(jnp.abs(bias[:, :, 1:] - bias[:, :, :-1])))
    hidden = jnp.concatenate(outs, axis=-1)
    y = (hidden.reshape(b * l, -1) @ params["wo"] + params["bo"]).reshape(b, l, -1)
    return y, norm


if __name__ == "__main__":
    # small shapes consistent with the module's forward
    batch, seq_len = 2, 8
    dim_in, dim_model = 16, 32
    dim_q = dim_k = 32          # bmm(q, k^T) requires dim_q == dim_k
    dim_s = 8
    num_heads = 2

    root = jax.random.PRNGKey(0)
    kp, kq, kk, kv, ks = jax.random.split(root, 5)
    params = init_params(kp, num_heads, dim_in, dim_model, dim_q, dim_k, dim_s, seq_len)

    query = jax.random.normal(kq, (batch, seq_len, dim_in), jnp.float32)
    key_t = jax.random.normal(kk, (batch, seq_len, dim_in), jnp.float32)
    value = jax.random.normal(kv, (batch, seq_len, dim_in), jnp.float32)
    sf = jax.random.normal(ks, (batch, dim_s), jnp.float32)

    out, norm = multi_head_attention_bias(query, key_t, value, sf, params)
    out = jax.block_until_ready(out)
    norm = jax.block_until_ready(norm)

    ref_out, ref_norm = reference(query, key_t, value, sf, params)
    # tolerance loosened slightly vs 1e-4: softmax denominator uses the EUP
    # approx reciprocal (pl.reciprocal(..., approx=True)).
    np.testing.assert_allclose(np.asarray(out), np.asarray(ref_out), rtol=5e-3, atol=5e-3)
    np.testing.assert_allclose(np.asarray(norm), np.asarray(ref_norm), rtol=5e-3, atol=5e-3)

    print("KERNEL_OK")
</pallas_src>

<mosaic_0001>
module attributes {stable_mosaic.version = 11 : i64} {
  func.func @_bias_mlp_kernel(%arg0: i32, %arg1: i32, %arg2: memref<2x8xf32, #tpu.memory_space<vmem>>, %arg3: memref<1x8x1024xf32, #tpu.memory_space<vmem>>, %arg4: memref<1x1x1024xf32, #tpu.memory_space<vmem>>, %arg5: memref<1x1024x64xf32, #tpu.memory_space<vmem>>, %arg6: memref<1x1x64xf32, #tpu.memory_space<vmem>>, %arg7: memref<1x2x64xf32, #tpu.memory_space<vmem>>, %arg8: memref<2x1024xf32, #tpu.memory_space<vmem>>) attributes {dimension_semantics = [#tpu.dimension_semantics<parallel>, #tpu.dimension_semantics<arbitrary>], iteration_bounds = array<i64: 2, 1>, scalar_prefetch = 0 : i64, scratch_operands = 1 : i64, tpu.core_type = #tpu.core_type<tc>, window_params = [{pipeline_mode = #tpu.pipeline_mode<synchronous>, transform_indices = @transform_0, window_bounds = array<i64: 2, 8>}, {transform_indices = @transform_1, window_bounds = array<i64: 1, 8, 1024>}, {transform_indices = @transform_2, window_bounds = array<i64: 1, 1, 1024>}, {transform_indices = @transform_3, window_bounds = array<i64: 1, 1024, 64>}, {transform_indices = @transform_4, window_bounds = array<i64: 1, 1, 64>}, {transform_indices = @transform_5, window_bounds = array<i64: 1, 2, 64>}]} {
    %c0_i32 = arith.constant 0 : i32
    %0 = arith.cmpi eq, %arg1, %c0_i32 : i32
    %1 = arith.extui %0 : i1 to i32
    %c0_i32_0 = arith.constant 0 : i32
    %2 = arith.cmpi ne, %1, %c0_i32_0 : i32
    scf.if %2 {
      %c0_11 = arith.constant 0 : index
      %c0_12 = arith.constant 0 : index
      %14 = vector.load %arg2[%c0_11, %c0_12] : memref<2x8xf32, #tpu.memory_space<vmem>>, vector<2x8xf32>
      %c0_13 = arith.constant 0 : index
      %c0_14 = arith.constant 0 : index
      %c0_15 = arith.constant 0 : index
      %15 = vector.load %arg3[%c0_13, %c0_14, %c0_15] : memref<1x8x1024xf32, #tpu.memory_space<vmem>>, vector<1x8x1024xf32>
      %16 = vector.shape_cast %15 : vector<1x8x1024xf32> to vector<8x1024xf32>
      %cst_16 = arith.constant dense<0.000000e+00> : vector<2x1024xf32>
      %17 = tpu.matmul %14, %16, %cst_16 {dimension_numbers = #tpu.dot_dimension_numbers<[1], [0], [0], [1], [0, 0, 1, 1], [], []>} : vector<2x8xf32>, vector<8x1024xf32>, vector<2x1024xf32> -> vector<2x1024xf32>
      %c0_17 = arith.constant 0 : index
      %c0_18 = arith.constant 0 : index
      %c0_19 = arith.constant 0 : index
      %18 = vector.load %arg4[%c0_17, %c0_18, %c0_19] : memref<1x1x1024xf32, #tpu.memory_space<vmem>>, vector<1x1x1024xf32>
      %19 = vector.shape_cast %18 : vector<1x1x1024xf32> to vector<1x1024xf32>
      %20 = vector.broadcast %19 : vector<1x1024xf32> to vector<2x1024xf32>
      %21 = arith.addf %17, %20 : vector<2x1024xf32>
      %cst_20 = arith.constant 0.000000e+00 : f32
      %22 = vector.broadcast %cst_20 : f32 to vector<2x1024xf32>
      %23 = arith.maximumf %21, %22 : vector<2x1024xf32>
      %c0_21 = arith.constant 0 : index
      %c0_22 = arith.constant 0 : index
      %24 = vector.load %arg8[%c0_21, %c0_22] : memref<2x1024xf32, #tpu.memory_space<vmem>>, vector<2x1024xf32>
      tpu.vector_store %arg8[%c0_21, %c0_22], %23 {strides = array<i32>} : memref<2x1024xf32, #tpu.memory_space<vmem>>, vector<2x1024xf32>,
    } else {
    }
    %c0 = arith.constant 0 : index
    %c0_1 = arith.constant 0 : index
    %3 = vector.load %arg8[%c0, %c0_1] : memref<2x1024xf32, #tpu.memory_space<vmem>>, vector<2x1024xf32>
    %c0_2 = arith.constant 0 : index
    %c0_3 = arith.constant 0 : index
    %c0_4 = arith.constant 0 : index
    %4 = vector.load %arg5[%c0_2, %c0_3, %c0_4] : memref<1x1024x64xf32, #tpu.memory_space<vmem>>, vector<1x1024x64xf32>
    %5 = vector.shape_cast %4 : vector<1x1024x64xf32> to vector<1024x64xf32>
    %cst = arith.constant dense<0.000000e+00> : vector<2x64xf32>
    %6 = tpu.matmul %3, %5, %cst {dimension_numbers = #tpu.dot_dimension_numbers<[1], [0], [0], [1], [0, 0, 1, 1], [], []>} : vector<2x1024xf32>, vector<1024x64xf32>, vector<2x64xf32> -> vector<2x64xf32>
    %c0_5 = arith.constant 0 : index
    %c0_6 = arith.constant 0 : index
    %c0_7 = arith.constant 0 : index
    %7 = vector.load %arg6[%c0_5, %c0_6, %c0_7] : memref<1x1x64xf32, #tpu.memory_space<vmem>>, vector<1x1x64xf32>
    %8 = vector.shape_cast %7 : vector<1x1x64xf32> to vector<1x64xf32>
    %9 = vector.broadcast %8 : vector<1x64xf32> to vector<2x64xf32>
    %10 = arith.addf %6, %9 : vector<2x64xf32>
    %c0_8 = arith.constant 0 : index
    %c0_9 = arith.constant 0 : index
    %c0_10 = arith.constant 0 : index
    %11 = vector.load %arg7[%c0_8, %c0_9, %c0_10] : memref<1x2x64xf32, #tpu.memory_space<vmem>>, vector<1x2x64xf32>
    %12 = vector.shape_cast %11 : vector<1x2x64xf32> to vector<2x64xf32>
    %13 = vector.shape_cast %10 : vector<2x64xf32> to vector<1x2x64xf32>
    tpu.vector_store %arg7[%c0_8, %c0_9, %c0_10], %13 {strides = array<i32>} : memref<1x2x64xf32, #tpu.memory_space<vmem>>, vector<1x2x64xf32>,
    return
  }
  func.func @transform_0(%arg0: i32, %arg1: i32) -> (i32, i32) {
    %c0_i32 = arith.constant 0 : i32
    %c0_i32_0 = arith.constant 0 : i32
    %c0_i32_1 = arith.constant 0 : i32
    return %c0_i32, %c0_i32_0 : i32, i32
  }
  func.func @transform_1(%arg0: i32, %arg1: i32) -> (i32, i32, i32) {
    %c0_i32 = arith.constant 0 : i32
    %c0_i32_0 = arith.constant 0 : i32
    %c0_i32_1 = arith.constant 0 : i32
    return %arg0, %c0_i32, %c0_i32_0 : i32, i32, i32
  }
  func.func @transform_2(%arg0: i32, %arg1: i32) -> (i32, i32, i32) {
    %c0_i32 = arith.constant 0 : i32
    %c0_i32_0 = arith.constant 0 : i32
    %c0_i32_1 = arith.constant 0 : i32
    return %arg0, %c0_i32, %c0_i32_0 : i32, i32, i32
  }
  func.func @transform_3(%arg0: i32, %arg1: i32) -> (i32, i32, i32) {
    %c0_i32 = arith.constant 0 : i32
    %c0_i32_0 = arith.constant 0 : i32
    return %arg0, %c0_i32, %arg1 : i32, i32, i32
  }
  func.func @transform_4(%arg0: i32, %arg1: i32) -> (i32, i32, i32) {
    %c0_i32 = arith.constant 0 : i32
    %c0_i32_0 = arith.constant 0 : i32
    return %arg0, %c0_i32, %arg1 : i32, i32, i32
  }
  func.func @transform_5(%arg0: i32, %arg1: i32) -> (i32, i32, i32) {
    %c0_i32 = arith.constant 0 : i32
    %c0_i32_0 = arith.constant 0 : i32
    return %arg0, %c0_i32, %arg1 : i32, i32, i32
  }
}

</mosaic_0001>

<llo_original>
// kernel: tpu_custom_call.1
$region0: #{tpu_custom_call.1}
  #allocation0 [shape = 'u32[]', space=smem, size = 0x4, offset = 0x4, fixed_abs, tag = 'smem constant byte address 0x4 - core index']
  #allocation1 [shape = 'u32[144,128]{1,0:T(1,128)}', space=vmem, size = 0x12000, scoped, tag = 'internal scratch']
  #allocation2 [shape = 'f32[2,1024]{1,0:T(2,128)}', space=vmem, size = 0x2000, scoped, tag = 'scratch operand']
  %s0 = inlined_call_operand.vmem [shape: f32[2,8], index: 0, kind: input, shape index: {}]
  %s1 = inlined_call_operand.vmem [shape: f32[2,8,1024], index: 1, kind: input, shape index: {}]
  %s2 = inlined_call_operand.vmem [shape: f32[2,1,1024], index: 2, kind: input, shape index: {}]
  %s3 = inlined_call_operand.vmem [shape: f32[2,1024,64], index: 3, kind: input, shape index: {}]
  %s4 = inlined_call_operand.vmem [shape: f32[2,1,64], index: 4, kind: input, shape index: {}]
  %s5 = inlined_call_operand.hbm [shape: f32[2,2,64], index: 5, kind: output, shape index: {}]
  %s6 = sld [smem:[#allocation0]]
  $region57: #{tpu_custom_call.1} parent=0
    _
  %s8 = ssub.s32 1, %s6
  %s9 = scalar_select 0, %s8, %s6
  $region1: #{tpu_custom_call.1} parent=0
    #allocation3 [shape = 'u8[2048]{0}', space=vmem, size = 0x800, scoped, tag = 'output window, operand 0']
    #allocation4 [shape = 's32[2]{0}', space=sflag, size = 0x8, scoped, tag = 'scoped memory for tpu_custom_call.1']
    %10 = vsyncpa [#allocation4], 0
    %s11 = scalar_lea.sflag [#allocation4], 1
    %12 = vsyncpa %s11, 0
    loop: start=0, step=1, limit=4
    $region2: #{tpu_custom_call.1} parent=1 // loop_pre_header
      _
    $region3: #{tpu_custom_call.1} parent=1 // loop_header
      %s14 = sphi 0, %s18
      %p15 = scmp.ge.s32.totalorder %s14, 4
      %s21 = sphi 0, %s33
      %s22 = sphi 0, %s29
      %s23 = sphi 0, %s21
      %s24 = sphi 0, %s22
      %s25 = sphi 0, %s23
      %s26 = sphi 0, %s24
      %s34 = sphi 0, %s34
      %s36 = sphi 0, %s34
      %s37 = sphi 0, %s36
      %s51 = sphi 0, %s37
      %s57 = sphi 0, %s59
      %s60 = sphi 0, %s57
      %s61 = sphi 0, %s60
      %s77 = sphi 0, %s61
      %s83 = sphi 0, %s85
      %s86 = sphi 0, %s83
      %s87 = sphi 0, %s86
      %s103 = sphi 0, %s87
      %s111 = sphi 0, %s113
      %s114 = sphi 0, %s111
      %s115 = sphi 0, %s114
      %s131 = sphi 0, %s115
      %s139 = sphi 0, %s141
      %s142 = sphi 0, %s139
      %s143 = sphi 0, %s142
      %s159 = sphi 0, %s143
      %s167 = sphi 0, %s169
      %s170 = sphi 0, %s167
      %s171 = sphi 0, %s170
      %s187 = sphi 0, %s171
    $region4: #{tpu_custom_call.1} parent=1 // loop_header_branch
      %17 = sbr.rel (%p15) target = $region8
    $region5: #{tpu_custom_call.1} parent=1 // loop_body
      %s19 = ssub.s32 %s14, 1
      %s20 = ssub.s32 %s14, 2
      %s27 = sadd.s32 1, %s22
      %p28 = scmp.ge.s32.totalorder %s27, 1
      %s29 = scalar_select %p28, 0, %s27
      %s30 = sadd.s32 1, %s21
      %s31 = scalar_select %p28, %s30, %s21
      %p32 = scmp.ge.s32.totalorder %s31, 2
      %s33 = scalar_select %p32, 0, %s31
      %s35 = sadd.s32 %s34, 1
      %p38 = scmp.eq.s32.totalorder %s14, 1
      %p39 = scmp.ne.s32.totalorder %s34, %s36
      %p40 = scmp.eq.s32.totalorder %s14, 0
      %p41 = por %p39, %p40
      %p42 = scmp.ne.s32.totalorder %s34, %s36
      %p43 = scmp.eq.s32.totalorder %s19, 1
      %p44 = por %p42, %p43
      %p45 = scmp.ne.s32.totalorder %s36, %s37
      %p46 = scmp.eq.s32.totalorder %s19, 0
      %p47 = por %p45, %p46
      %p48 = scmp.ne.s32.totalorder %s36, %s37
      %p49 = scmp.eq.s32.totalorder %s20, 1
      %p50 = por %p48, %p49
      %p52 = scmp.ne.s32.totalorder %s37, %s51
      %p53 = scmp.eq.s32.totalorder %s20, 0
      %p54 = por %p52, %p53
      %s55 = ssub.s32 %s21, %s33
      %p56 = scmp.eq.s32.totalorder %s55, 0
      %s58 = sadd.s32 %s57, 1
      %s59 = scalar_select %p56, %s57, %s58
      %p62 = pneg %p56
      %p63 = scmp.eq.s32.totalorder %s14, 1
      %p64 = por %p62, %p63
      %p65 = scmp.ne.s32.totalorder %s57, %s60
      %p66 = scmp.eq.s32.totalorder %s14, 0
      %p67 = por %p65, %p66
      %p68 = scmp.ne.s32.totalorder %s57, %s60
      %p69 = scmp.eq.s32.totalorder %s19, 1
      %p70 = por %p68, %p69
      %p71 = scmp.ne.s32.totalorder %s60, %s61
      %p72 = scmp.eq.s32.totalorder %s19, 0
      %p73 = por %p71, %p72
      %p74 = scmp.ne.s32.totalorder %s60, %s61
      %p75 = scmp.eq.s32.totalorder %s20, 1
      %p76 = por %p74, %p75
      %p78 = scmp.ne.s32.totalorder %s61, %s77
      %p79 = scmp.eq.s32.totalorder %s20, 0
      %p80 = por %p78, %p79
      %s81 = ssub.s32 %s21, %s33
      %p82 = scmp.eq.s32.totalorder %s81, 0
      %s84 = sadd.s32 %s83, 1
      %s85 = scalar_select %p82, %s83, %s84
      %p88 = pneg %p82
      %p89 = scmp.eq.s32.totalorder %s14, 1
      %p90 = por %p88, %p89
      %p91 = scmp.ne.s32.totalorder %s83, %s86
      %p92 = scmp.eq.s32.totalorder %s14, 0
      %p93 = por %p91, %p92
      %p94 = scmp.ne.s32.totalorder %s83, %s86
      %p95 = scmp.eq.s32.totalorder %s19, 1
      %p96 = por %p94, %p95
      %p97 = scmp.ne.s32.totalorder %s86, %s87
      %p98 = scmp.eq.s32.totalorder %s19, 0
      %p99 = por %p97, %p98
      %p100 = scmp.ne.s32.totalorder %s86, %s87
      %p101 = scmp.eq.s32.totalorder %s20, 1
      %p102 = por %p100, %p101
      %p104 = scmp.ne.s32.totalorder %s87, %s103
      %p105 = scmp.eq.s32.totalorder %s20, 0
      %p106 = por %p104, %p105
      %s107 = ssub.s32 %s21, %s33
      %s108 = ssub.s32 %s22, %s29
      %s109 = sor.u32 %s107, %s108
      %p110 = scmp.eq.s32.totalorder %s109, 0
      %s112 = sadd.s32 %s111, 1
      %s113 = scalar_select %p110, %s111, %s112
      %p116 = pneg %p110
      %p117 = scmp.eq.s32.totalorder %s14, 1
      %p118 = por %p116, %p117
      %p119 = scmp.ne.s32.totalorder %s111, %s114
      %p120 = scmp.eq.s32.totalorder %s14, 0
      %p121 = por %p119, %p120
      %p122 = scmp.ne.s32.totalorder %s111, %s114
      %p123 = scmp.eq.s32.totalorder %s19, 1
      %p124 = por %p122, %p123
      %p125 = scmp.ne.s32.totalorder %s114, %s115
      %p126 = scmp.eq.s32.totalorder %s19, 0
      %p127 = por %p125, %p126
      %p128 = scmp.ne.s32.totalorder %s114, %s115
      %p129 = scmp.eq.s32.totalorder %s20, 1
      %p130 = por %p128, %p129
      %p132 = scmp.ne.s32.totalorder %s115, %s131
      %p133 = scmp.eq.s32.totalorder %s20, 0
      %p134 = por %p132, %p133
      %s135 = ssub.s32 %s21, %s33
      %s136 = ssub.s32 %s22, %s29
      %s137 = sor.u32 %s135, %s136
      %p138 = scmp.eq.s32.totalorder %s137, 0
      %s140 = sadd.s32 %s139, 1
      %s141 = scalar_select %p138, %s139, %s140
      %p144 = pneg %p138
      %p145 = scmp.eq.s32.totalorder %s14, 1
      %p146 = por %p144, %p145
      %p147 = scmp.ne.s32.totalorder %s139, %s142
      %p148 = scmp.eq.s32.totalorder %s14, 0
      %p149 = por %p147, %p148
      %p150 = scmp.ne.s32.totalorder %s139, %s142
      %p151 = scmp.eq.s32.totalorder %s19, 1
      %p152 = por %p150, %p151
      %p153 = scmp.ne.s32.totalorder %s142, %s143
      %p154 = scmp.eq.s32.totalorder %s19, 0
      %p155 = por %p153, %p154
      %p156 = scmp.ne.s32.totalorder %s142, %s143
      %p157 = scmp.eq.s32.totalorder %s20, 1
      %p158 = por %p156, %p157
      %p160 = scmp.ne.s32.totalorder %s143, %s159
      %p161 = scmp.eq.s32.totalorder %s20, 0
      %p162 = por %p160, %p161
      %s163 = ssub.s32 %s21, %s33
      %s164 = ssub.s32 %s22, %s29
      %s165 = sor.u32 %s163, %s164
      %p166 = scmp.eq.s32.totalorder %s165, 0
      %s168 = sadd.s32 %s167, 1
      %s169 = scalar_select %p166, %s167, %s168
      %p172 = pneg %p166
      %p173 = scmp.eq.s32.totalorder %s14, 1
      %p174 = por %p172, %p173
      %p175 = scmp.ne.s32.totalorder %s167, %s170
      %p176 = scmp.eq.s32.totalorder %s14, 0
      %p177 = por %p175, %p176
      %p178 = scmp.ne.s32.totalorder %s167, %s170
      %p179 = scmp.eq.s32.totalorder %s19, 1
      %p180 = por %p178, %p179
      %p181 = scmp.ne.s32.totalorder %s170, %s171
      %p182 = scmp.eq.s32.totalorder %s19, 0
      %p183 = por %p181, %p182
      %p184 = scmp.ne.s32.totalorder %s170, %s171
      %p185 = scmp.eq.s32.totalorder %s20, 1
      %p186 = por %p184, %p185
      %p188 = scmp.ne.s32.totalorder %s171, %s187
      %p189 = scmp.eq.s32.totalorder %s20, 0
      %p190 = por %p188, %p189
      %p191 = scmp.le.s32.totalorder 1, %s14
      %p192 = scmp.lt.s32.totalorder %s14, 3
      %p193 = pnand %p191, %p192
      %p194 = pneg %p193
      // Predicated region
      $region9: #{tpu_custom_call.1} parent=5 // pred_check
        _
      $region10: #{tpu_custom_call.1} parent=5 // pred_check_branch
        %196 = sbr.rel (%p193) target = $region12
      $region11: #{tpu_custom_call.1} parent=5 // pred_region
        %s197 = ssub.s32 %s14, 1
        // Predicated region
        $region13: #{tpu_custom_call.1} parent=11 // pred_check
          %p198 = pneg %p47
        $region14: #{tpu_custom_call.1} parent=11 // pred_check_branch
          %200 = sbr.rel (%p198) target = $region16
        $region15: #{tpu_custom_call.1} parent=11 // pred_region
          _
        $region16: #{tpu_custom_call.1} parent=11 // pred_fallthru
          _
      $region12: #{tpu_custom_call.1} parent=5 // pred_fallthru
        _
      %p201 = scmp.lt.s32.totalorder %s14, 2
      // Predicated region
      $region17: #{tpu_custom_call.1} parent=5 // pred_check
        %p202 = pneg %p201
      $region18: #{tpu_custom_call.1} parent=5 // pred_check_branch
        %204 = sbr.rel (%p202) target = $region20
      $region19: #{tpu_custom_call.1} parent=5 // pred_region
        // Predicated region
        $region21: #{tpu_custom_call.1} parent=19 // pred_check
          %p205 = pneg %p67
        $region22: #{tpu_custom_call.1} parent=19 // pred_check_branch
          %207 = sbr.rel (%p205) target = $region24
        $region23: #{tpu_custom_call.1} parent=19 // pred_region
          %p208 = scmp.lt.s32.totalorder %s21, 1
          %s209 = scalar_select %p208, %s21, 1
          %s210 = smul.addr %s209, 8
          %s211 = smul.addr %s210, 8
          %s212 = scalar_lea.vmem %s1, %s211
        $region24: #{tpu_custom_call.1} parent=19 // pred_fallthru
          _
        // Predicated region
        $region25: #{tpu_custom_call.1} parent=19 // pred_check
          %p213 = pneg %p93
        $region26: #{tpu_custom_call.1} parent=19 // pred_check_branch
          %215 = sbr.rel (%p213) target = $region28
        $region27: #{tpu_custom_call.1} parent=19 // pred_region
          %p216 = scmp.lt.s32.totalorder %s21, 1
          %s217 = scalar_select %p216, %s21, 1
          %s218 = smul.addr %s217, 8
          %s219 = scalar_lea.vmem %s2, %s218
        $region28: #{tpu_custom_call.1} parent=19 // pred_fallthru
          _
        // Predicated region
        $region29: #{tpu_custom_call.1} parent=19 // pred_check
          %p220 = pneg %p121
        $region30: #{tpu_custom_call.1} parent=19 // pred_check_branch
          %222 = sbr.rel (%p220) target = $region32
        $region31: #{tpu_custom_call.1} parent=19 // pred_region
          %p223 = scmp.lt.s32.totalorder %s21, 1
          %s224 = scalar_select %p223, %s21, 1
          %p225 = scmp.lt.s32.totalorder %s22, 0
          %s226 = scalar_select %p225, %s22, 0
          %s227 = smul.addr %s224, 128
          %s228 = sadd.s32 %s226, %s227
          %s229 = smul.addr %s228, 8
          %s230 = scalar_lea.vmem %s3, %s229
        $region32: #{tpu_custom_call.1} parent=19 // pred_fallthru
          _
        // Predicated region
        $region33: #{tpu_custom_call.1} parent=19 // pred_check
          %p231 = pneg %p149
        $region34: #{tpu_custom_call.1} parent=19 // pred_check_branch
          %233 = sbr.rel (%p231) target = $region36
        $region35: #{tpu_custom_call.1} parent=19 // pred_region
          %p234 = scmp.lt.s32.totalorder %s21, 1
          %s235 = scalar_select %p234, %s21, 1
          %p236 = scmp.lt.s32.totalorder %s22, 0
          %s237 = scalar_select %p236, %s22, 0
          %s238 = sadd.s32 %s237, %s235
          %s239 = scalar_lea.vmem %s4, %s238
        $region36: #{tpu_custom_call.1} parent=19 // pred_fallthru
          _
      $region20: #{tpu_custom_call.1} parent=5 // pred_fallthru
        _
      %p240 = scmp.le.s32.totalorder 1, %s14
      %p241 = scmp.lt.s32.totalorder %s14, 3
      %p242 = pnand %p240, %p241
      %p243 = pneg %p242
      // Predicated region
      $region37: #{tpu_custom_call.1} parent=5 // pred_check
        _
      $region38: #{tpu_custom_call.1} parent=5 // pred_check_branch
        %245 = sbr.rel (%p242) target = $region40
      $region39: #{tpu_custom_call.1} parent=5 // pred_region
        %s246 = ssub.s32 %s14, 1
        %p247 = pneg %p47
        %p248 = pneg %p44
        %p249 = scmp.lt.s32.totalorder %s23, 1
        %s250 = scalar_select %p249, %s23, 1
        %s251 = smul.addr %s250, 8
        %s252 = smul.addr %s251, 8
        %s253 = scalar_lea.vmem %s1, %s252
        %p254 = pneg %p73
        %p255 = pneg %p70
        %p256 = scmp.lt.s32.totalorder %s23, 1
        %s257 = scalar_select %p256, %s23, 1
        %s258 = smul.addr %s257, 8
        %s259 = scalar_lea.vmem %s2, %s258
        %p260 = pneg %p99
        %p261 = pneg %p96
        %p262 = scmp.lt.s32.totalorder %s23, 1
        %s263 = scalar_select %p262, %s23, 1
        %p264 = scmp.lt.s32.totalorder %s24, 0
        %s265 = scalar_select %p264, %s24, 0
        %s266 = smul.addr %s263, 128
        %s267 = sadd.s32 %s265, %s266
        %s268 = smul.addr %s267, 8
        %s269 = scalar_lea.vmem %s3, %s268
        %p270 = pneg %p127
        %p271 = pneg %p124
        %p272 = scmp.lt.s32.totalorder %s23, 1
        %s273 = scalar_select %p272, %s23, 1
        %p274 = scmp.lt.s32.totalorder %s24, 0
        %s275 = scalar_select %p274, %s24, 0
        %s276 = sadd.s32 %s275, %s273
        %s277 = scalar_lea.vmem %s4, %s276
        %p278 = pneg %p155
        %p279 = pneg %p152
        %p280 = pneg %p183
        %p281 = pneg %p180
        %s282 = sand.u32 %s170, 1
        %s283 = scalar_lea.sflag [#allocation4], %s282
        %s284 = sand.u32 %s170, 1
        %s285 = smul.addr %s284, 2
        %s286 = scalar_lea.vmem [#allocation3], %s285
        %p287 = scmp.lt.s32.totalorder %s23, 1
        %s288 = scalar_select %p287, %s23, 1
        %s289 = smul.addr %s288, 8
        %s290 = smul.addr %s289, 8
        %s291 = scalar_lea.vmem %s1, %s290
        %p292 = scmp.lt.s32.totalorder %s23, 1
        %s293 = scalar_select %p292, %s23, 1
        %s294 = smul.addr %s293, 8
        %s295 = scalar_lea.vmem %s2, %s294
        %p296 = scmp.lt.s32.totalorder %s23, 1
        %s297 = scalar_select %p296, %s23, 1
        %p298 = scmp.lt.s32.totalorder %s24, 0
        %s299 = scalar_select %p298, %s24, 0
        %s300 = smul.addr %s297, 128
        %s301 = sadd.s32 %s299, %s300
        %s302 = smul.addr %s301, 8
        %s303 = scalar_lea.vmem %s3, %s302
        %p304 = scmp.lt.s32.totalorder %s23, 1
        %s305 = scalar_select %p304, %s23, 1
        %p306 = scmp.lt.s32.totalorder %s24, 0
        %s307 = scalar_select %p306, %s24, 0
        %s308 = sadd.s32 %s307, %s305
        %s309 = scalar_lea.vmem %s4, %s308
        %p310 = scmp.eq.s32.totalorder %s24, 0
        // Predicated region
        $region41: #{tpu_custom_call.1} parent=39 // pred_check
          %p311 = pneg %p310
        $region42: #{tpu_custom_call.1} parent=39 // pred_check_branch
          %313 = sbr.rel (%p311) target = $region44
        $region43: #{tpu_custom_call.1} parent=39 // pred_region
          %v314 = vld [vmem:[%s0] sm:$0x3]
          %v315 = vld [vmem:[%s291] sm:$0xff]
          %v316 = vld [vmem:[%s291 + $0x8] sm:$0xff]
          %v317 = vld [vmem:[%s291 + $0x10] sm:$0xff]
          %v318 = vld [vmem:[%s291 + $0x18] sm:$0xff]
          %v319 = vld [vmem:[%s291 + $0x20] sm:$0xff]
          %v320 = vld [vmem:[%s291 + $0x28] sm:$0xff]
          %v321 = vld [vmem:[%s291 + $0x30] sm:$0xff]
          %v322 = vld [vmem:[%s291 + $0x38] sm:$0xff]
          %v323 = vld [vmem:[%s295] sm:$0xff]
          %v325 = vlaneseq
          %v326 = vshrl.u32 %v325, 7
          %v327 = vsub.s32 0, %v326
          %v328 = vrot.slane %v323, %v327
          %v329 = vlaneseq
          %v330 = vshrl.u32 %v329, 7
          %v331 = vsub.s32 1, %v330
          %v332 = vrot.slane %v323, %v331
          %v333 = vlaneseq
          %v334 = vshrl.u32 %v333, 7
          %v335 = vsub.s32 2, %v334
          %v336 = vrot.slane %v323, %v335
          %v337 = vlaneseq
          %v338 = vshrl.u32 %v337, 7
          %v339 = vsub.s32 3, %v338
          %v340 = vrot.slane %v323, %v339
          %v341 = vlaneseq
          %v342 = vshrl.u32 %v341, 7
          %v343 = vsub.s32 4, %v342
          %v344 = vrot.slane %v323, %v343
          %v345 = vlaneseq
          %v346 = vshrl.u32 %v345, 7
          %v347 = vsub.s32 5, %v346
          %v348 = vrot.slane %v323, %v347
          %v349 = vlaneseq
          %v350 = vshrl.u32 %v349, 7
          %v351 = vsub.s32 6, %v350
          %v352 = vrot.slane %v323, %v351
          %v353 = vlaneseq
          %v354 = vshrl.u32 %v353, 7
          %v355 = vsub.s32 7, %v354
          %v356 = vrot.slane %v323, %v355
          %vm365 = vcmask 64512
          %v367 = vsel %vm365, %v314, 0
          %369 = vmatprep.subr.mxu0 %v316
          %370 = vmatpush1.msra.mxu0 %v315
          %371 = vmatprep.subr.mxu0 0.0
          %372 = vmatpush1.msra.mxu0 0.0
          %373 = vmatprep.subr.mxu0 0.0
          %374 = vmatpush1.msra.mxu0 0.0
          %375 = vmatprep.subr.mxu0 0.0
          %376 = vmatpush1.msra.mxu0 0.0
          %377 = vmatprep.subr.mxu0 0.0
          %378 = vmatpush1.msra.mxu0 0.0
          %379 = vmatprep.subr.mxu0 0.0
          %380 = vmatpush1.msra.mxu0 0.0
          %381 = vmatprep.subr.mxu0 0.0
          %382 = vmatpush1.msra.mxu0 0.0
          %383 = vmatprep.subr.mxu0 0.0
          %384 = vmatpush1.msra.mxu0 0.0
          %385 = vmatprep.subr.mxu0 0.0
          %386 = vmatpush1.msra.mxu0 0.0
          %387 = vmatprep.subr.mxu0 0.0
          %388 = vmatpush1.msra.mxu0 0.0
          %389 = vmatprep.subr.mxu0 0.0
          %390 = vmatpush1.msra.mxu0 0.0
          %391 = vmatprep.subr.mxu0 0.0
          %392 = vmatpush1.msra.mxu0 0.0
          %393 = vmatprep.subr.mxu0 0.0
          %394 = vmatpush1.msra.mxu0 0.0
          %395 = vmatprep.subr.mxu0 0.0
          %396 = vmatpush1.msra.mxu0 0.0
          %397 = vmatprep.subr.mxu0 0.0
          %398 = vmatpush1.msra.mxu0 0.0
          %399 = vmatprep.subr.mxu0 0.0
          %400 = vmatpush1.msra.mxu0 0.0
          %401 = vmatprep.subr.mxu0 0.0
          %402 = vmatpush1.msra.mxu0 0.0
          %403 = vmatprep.subr.mxu0 0.0
          %404 = vmatpush1.msra.mxu0 0.0
          %405 = vmatprep.subr.mxu0 0.0
          %406 = vmatpush1.msra.mxu0 0.0
          %407 = vmatprep.subr.mxu0 0.0
          %408 = vmatpush1.msra.mxu0 0.0
          %409 = vmatprep.subr.mxu0 0.0
          %410 = vmatpush1.msra.mxu0 0.0
          %411 = vmatprep.subr.mxu0 0.0
          %412 = vmatpush1.msra.mxu0 0.0
          %413 = vmatprep.subr.mxu0 0.0
          %414 = vmatpush1.msra.mxu0 0.0
          %415 = vmatprep.subr.mxu0 0.0
          %416 = vmatpush1.msra.mxu0 0.0
          %417 = vmatprep.subr.mxu0 0.0
          %418 = vmatpush1.msra.mxu0 0.0
          %419 = vmatprep.subr.mxu0 0.0
          %420 = vmatpush1.msra.mxu0 0.0
          %421 = vmatprep.subr.mxu0 0.0
          %422 = vmatpush1.msra.mxu0 0.0
          %423 = vmatprep.subr.mxu0 0.0
          %424 = vmatpush1.msra.mxu0 0.0
          %425 = vmatprep.subr.mxu0 0.0
          %426 = vmatpush1.msra.mxu0 0.0
          %427 = vmatprep.subr.mxu0 0.0
          %428 = vmatpush1.msra.mxu0 0.0
          %429 = vmatprep.subr.mxu0 0.0
          %430 = vmatpush1.msra.mxu0 0.0
          %431 = vmatprep.subr.mxu0 0.0
          %432 = vmatpush1.msra.mxu0 0.0
          %433 = vmatprep.mubr.f32.mxu0 0.0
          %434 = vmatmul.mubr.f32.gmra.mrb[0].mxu0 %v367
          %v435 = vpop.f32.mrb[0].mxu0
          %v436 = vadd.f32 %v328, %v435
          %v437 = vpop.f32.mrb[0].mxu0
          %v438 = vadd.f32 %v332, %v437
          %439 = vdwg.mxu0
          %440 = vmatprep.subr.mxu0 %v318
          %441 = vmatpush1.msra.mxu0 %v317
          %442 = vmatprep.subr.mxu0 0.0
          %443 = vmatpush1.msra.mxu0 0.0
          %444 = vmatprep.subr.mxu0 0.0
          %445 = vmatpush1.msra.mxu0 0.0
          %446 = vmatprep.subr.mxu0 0.0
          %447 = vmatpush1.msra.mxu0 0.0
          %448 = vmatprep.subr.mxu0 0.0
          %449 = vmatpush1.msra.mxu0 0.0
          %450 = vmatprep.subr.mxu0 0.0
          %451 = vmatpush1.msra.mxu0 0.0
          %452 = vmatprep.subr.mxu0 0.0
          %453 = vmatpush1.msra.mxu0 0.0
          %454 = vmatprep.subr.mxu0 0.0
          %455 = vmatpush1.msra.mxu0 0.0
          %456 = vmatprep.subr.mxu0 0.0
          %457 = vmatpush1.msra.mxu0 0.0
          %458 = vmatprep.subr.mxu0 0.0
          %459 = vmatpush1.msra.mxu0 0.0
          %460 = vmatprep.subr.mxu0 0.0
          %461 = vmatpush1.msra.mxu0 0.0
          %462 = vmatprep.subr.mxu0 0.0
          %463 = vmatpush1.msra.mxu0 0.0
          %464 = vmatprep.subr.mxu0 0.0
          %465 = vmatpush1.msra.mxu0 0.0
          %466 = vmatprep.subr.mxu0 0.0
          %467 = vmatpush1.msra.mxu0 0.0
          %468 = vmatprep.subr.mxu0 0.0
          %469 = vmatpush1.msra.mxu0 0.0
          %470 = vmatprep.subr.mxu0 0.0
          %471 = vmatpush1.msra.mxu0 0.0
          %472 = vmatprep.subr.mxu0 0.0
          %473 = vmatpush1.msra.mxu0 0.0
          %474 = vmatprep.subr.mxu0 0.0
          %475 = vmatpush1.msra.mxu0 0.0
          %476 = vmatprep.subr.mxu0 0.0
          %477 = vmatpush1.msra.mxu0 0.0
          %478 = vmatprep.subr.mxu0 0.0
          %479 = vmatpush1.msra.mxu0 0.0
          %480 = vmatprep.subr.mxu0 0.0
          %481 = vmatpush1.msra.mxu0 0.0
          %482 = vmatprep.subr.mxu0 0.0
          %483 = vmatpush1.msra.mxu0 0.0
          %484 = vmatprep.subr.mxu0 0.0
          %485 = vmatpush1.msra.mxu0 0.0
          %486 = vmatprep.subr.mxu0 0.0
          %487 = vmatpush1.msra.mxu0 0.0
          %488 = vmatprep.subr.mxu0 0.0
          %489 = vmatpush1.msra.mxu0 0.0
          %490 = vmatprep.subr.mxu0 0.0
          %491 = vmatpush1.msra.mxu0 0.0
          %492 = vmatprep.subr.mxu0 0.0
          %493 = vmatpush1.msra.mxu0 0.0
          %494 = vmatprep.subr.mxu0 0.0
          %495 = vmatpush1.msra.mxu0 0.0
          %496 = vmatprep.subr.mxu0 0.0
          %497 = vmatpush1.msra.mxu0 0.0
          %498 = vmatprep.subr.mxu0 0.0
          %499 = vmatpush1.msra.mxu0 0.0
          %500 = vmatprep.subr.mxu0 0.0
          %501 = vmatpush1.msra.mxu0 0.0
          %502 = vmatprep.subr.mxu0 0.0
          %503 = vmatpush1.msra.mxu0 0.0
          %504 = vmatprep.mubr.f32.mxu0 0.0
          %505 = vmatmul.mubr.f32.gmra.mrb[0].mxu0 %v367
          %v506 = vpop.f32.mrb[0].mxu0
          %v507 = vadd.f32 %v336, %v506
          %v508 = vpop.f32.mrb[0].mxu0
          %v509 = vadd.f32 %v340, %v508
          %510 = vdwg.mxu0
          %511 = vmatprep.subr.mxu0 %v320
          %512 = vmatpush1.msra.mxu0 %v319
          %513 = vmatprep.subr.mxu0 0.0
          %514 = vmatpush1.msra.mxu0 0.0
          %515 = vmatprep.subr.mxu0 0.0
          %516 = vmatpush1.msra.mxu0 0.0
          %517 = vmatprep.subr.mxu0 0.0
          %518 = vmatpush1.msra.mxu0 0.0
          %519 = vmatprep.subr.mxu0 0.0
          %520 = vmatpush1.msra.mxu0 0.0
          %521 = vmatprep.subr.mxu0 0.0
          %522 = vmatpush1.msra.mxu0 0.0
          %523 = vmatprep.subr.mxu0 0.0
          %524 = vmatpush1.msra.mxu0 0.0
          %525 = vmatprep.subr.mxu0 0.0
          %526 = vmatpush1.msra.mxu0 0.0
          %527 = vmatprep.subr.mxu0 0.0
          %528 = vmatpush1.msra.mxu0 0.0
          %529 = vmatprep.subr.mxu0 0.0
          %530 = vmatpush1.msra.mxu0 0.0
          %531 = vmatprep.subr.mxu0 0.0
          %532 = vmatpush1.msra.mxu0 0.0
          %533 = vmatprep.subr.mxu0 0.0
          %534 = vmatpush1.msra.mxu0 0.0
          %535 = vmatprep.subr.mxu0 0.0
          %536 = vmatpush1.msra.mxu0 0.0
          %537 = vmatprep.subr.mxu0 0.0
          %538 = vmatpush1.msra.mxu0 0.0
          %539 = vmatprep.subr.mxu0 0.0
          %540 = vmatpush1.msra.mxu0 0.0
          %541 = vmatprep.subr.mxu0 0.0
          %542 = vmatpush1.msra.mxu0 0.0
          %543 = vmatprep.subr.mxu0 0.0
          %544 = vmatpush1.msra.mxu0 0.0
          %545 = vmatprep.subr.mxu0 0.0
          %546 = vmatpush1.msra.mxu0 0.0
          %547 = vmatprep.subr.mxu0 0.0
          %548 = vmatpush1.msra.mxu0 0.0
          %549 = vmatprep.subr.mxu0 0.0
          %550 = vmatpush1.msra.mxu0 0.0
          %551 = vmatprep.subr.mxu0 0.0
          %552 = vmatpush1.msra.mxu0 0.0
          %553 = vmatprep.subr.mxu0 0.0
          %554 = vmatpush1.msra.mxu0 0.0
          %555 = vmatprep.subr.mxu0 0.0
          %556 = vmatpush1.msra.mxu0 0.0
          %557 = vmatprep.subr.mxu0 0.0
          %558 = vmatpush1.msra.mxu0 0.0
          %559 = vmatprep.subr.mxu0 0.0
          %560 = vmatpush1.msra.mxu0 0.0
          %561 = vmatprep.subr.mxu0 0.0
          %562 = vmatpush1.msra.mxu0 0.0
          %563 = vmatprep.subr.mxu0 0.0
          %564 = vmatpush1.msra.mxu0 0.0
          %565 = vmatprep.subr.mxu0 0.0
          %566 = vmatpush1.msra.mxu0 0.0
          %567 = vmatprep.subr.mxu0 0.0
          %568 = vmatpush1.msra.mxu0 0.0
          %569 = vmatprep.subr.mxu0 0.0
          %570 = vmatpush1.msra.mxu0 0.0
          %571 = vmatprep.subr.mxu0 0.0
          %572 = vmatpush1.msra.mxu0 0.0
          %573 = vmatprep.subr.mxu0 0.0
          %574 = vmatpush1.msra.mxu0 0.0
          %575 = vmatprep.mubr.f32.mxu0 0.0
          %576 = vmatmul.mubr.f32.gmra.mrb[0].mxu0 %v367
          %v577 = vpop.f32.mrb[0].mxu0
          %v578 = vadd.f32 %v344, %v577
          %v579 = vpop.f32.mrb[0].mxu0
          %v580 = vadd.f32 %v348, %v579
          %581 = vdwg.mxu0
          %582 = vmatprep.subr.mxu0 %v322
          %583 = vmatpush1.msra.mxu0 %v321
          %584 = vmatprep.subr.mxu0 0.0
          %585 = vmatpush1.msra.mxu0 0.0
          %586 = vmatprep.subr.mxu0 0.0
          %587 = vmatpush1.msra.mxu0 0.0
          %588 = vmatprep.subr.mxu0 0.0
          %589 = vmatpush1.msra.mxu0 0.0
          %590 = vmatprep.subr.mxu0 0.0
          %591 = vmatpush1.msra.mxu0 0.0
          %592 = vmatprep.subr.mxu0 0.0
          %593 = vmatpush1.msra.mxu0 0.0
          %594 = vmatprep.subr.mxu0 0.0
          %595 = vmatpush1.msra.mxu0 0.0
          %596 = vmatprep.subr.mxu0 0.0
          %597 = vmatpush1.msra.mxu0 0.0
          %598 = vmatprep.subr.mxu0 0.0
          %599 = vmatpush1.msra.mxu0 0.0
          %600 = vmatprep.subr.mxu0 0.0
          %601 = vmatpush1.msra.mxu0 0.0
          %602 = vmatprep.subr.mxu0 0.0
          %603 = vmatpush1.msra.mxu0 0.0
          %604 = vmatprep.subr.mxu0 0.0
          %605 = vmatpush1.msra.mxu0 0.0
          %606 = vmatprep.subr.mxu0 0.0
          %607 = vmatpush1.msra.mxu0 0.0
          %608 = vmatprep.subr.mxu0 0.0
          %609 = vmatpush1.msra.mxu0 0.0
          %610 = vmatprep.subr.mxu0 0.0
          %611 = vmatpush1.msra.mxu0 0.0
          %612 = vmatprep.subr.mxu0 0.0
          %613 = vmatpush1.msra.mxu0 0.0
          %614 = vmatprep.subr.mxu0 0.0
          %615 = vmatpush1.msra.mxu0 0.0
          %616 = vmatprep.subr.mxu0 0.0
          %617 = vmatpush1.msra.mxu0 0.0
          %618 = vmatprep.subr.mxu0 0.0
          %619 = vmatpush1.msra.mxu0 0.0
          %620 = vmatprep.subr.mxu0 0.0
          %621 = vmatpush1.msra.mxu0 0.0
          %622 = vmatprep.subr.mxu0 0.0
          %623 = vmatpush1.msra.mxu0 0.0
          %624 = vmatprep.subr.mxu0 0.0
          %625 = vmatpush1.msra.mxu0 0.0
          %626 = vmatprep.subr.mxu0 0.0
          %627 = vmatpush1.msra.mxu0 0.0
          %628 = vmatprep.subr.mxu0 0.0
          %629 = vmatpush1.msra.mxu0 0.0
          %630 = vmatprep.subr.mxu0 0.0
          %631 = vmatpush1.msra.mxu0 0.0
          %632 = vmatprep.subr.mxu0 0.0
          %633 = vmatpush1.msra.mxu0 0.0
          %634 = vmatprep.subr.mxu0 0.0
          %635 = vmatpush1.msra.mxu0 0.0
          %636 = vmatprep.subr.mxu0 0.0
          %637 = vmatpush1.msra.mxu0 0.0
          %638 = vmatprep.subr.mxu0 0.0
          %639 = vmatpush1.msra.mxu0 0.0
          %640 = vmatprep.subr.mxu0 0.0
          %641 = vmatpush1.msra.mxu0 0.0
          %642 = vmatprep.subr.mxu0 0.0
          %643 = vmatpush1.msra.mxu0 0.0
          %644 = vmatprep.subr.mxu0 0.0
          %645 = vmatpush1.msra.mxu0 0.0
          %646 = vmatprep.mubr.f32.mxu0 0.0
          %647 = vmatmul.mubr.f32.gmra.mrb[0].mxu0 %v367
          %v648 = vpop.f32.mrb[0].mxu0
          %v649 = vadd.f32 %v352, %v648
          %v650 = vpop.f32.mrb[0].mxu0
          %v651 = vadd.f32 %v356, %v650
          %652 = vdwg.mxu0
          %v653 = vmax.f32 %v436, 0.0
          %v654 = vmax.f32 %v438, 0.0
          %v655 = vmax.f32 %v507, 0.0
          %v656 = vmax.f32 %v509, 0.0
          %v657 = vmax.f32 %v578, 0.0
          %v658 = vmax.f32 %v580, 0.0
          %v659 = vmax.f32 %v649, 0.0
          %v660 = vmax.f32 %v651, 0.0
          %v669 = vcombine.low %v653, %v654
          %v670 = vcombine.low %v655, %v656
          %v672 = vunpack.c.l.s4 1983009808
          %v673 = vunpack.c.0.s8 %v672
          %v674 = vlaneseq
          %v675 = vshrl.u32 %v674, 7
          %v676 = vsub.s32 %v673, %v675
          %v677 = vrot.slane %v669, %v676
          %v679 = vunpack.c.l.s4 1983009808
          %v680 = vunpack.c.0.s8 %v679
          %v681 = vlaneseq
          %v682 = vshrl.u32 %v681, 7
          %v683 = vsub.s32 %v680, %v682
          %v684 = vrot.slane %v670, %v683
          %v685 = vcombine.low %v677, %v684
          %v686 = vcombine.low %v657, %v658
          %v687 = vcombine.low %v659, %v660
          %v689 = vunpack.c.l.s4 1983009808
          %v690 = vunpack.c.0.s8 %v689
          %v691 = vlaneseq
          %v692 = vshrl.u32 %v691, 7
          %v693 = vsub.s32 %v690, %v692
          %v694 = vrot.slane %v686, %v693
          %v696 = vunpack.c.l.s4 1983009808
          %v697 = vunpack.c.0.s8 %v696
          %v698 = vlaneseq
          %v699 = vshrl.u32 %v698, 7
          %v700 = vsub.s32 %v697, %v699
          %v701 = vrot.slane %v687, %v700
          %v702 = vcombine.low %v694, %v701
          %705 = vst [vmem:[#allocation2] sm:$0xff] %v685
          %706 = vst [vmem:[#allocation2 + $0x8] sm:$0xff] %v702
        $region44: #{tpu_custom_call.1} parent=39 // pred_fallthru
          _
        %v707 = vld [vmem:[#allocation2] sm:$0xff]
        %v708 = vld [vmem:[#allocation2 + $0x8] sm:$0xff]
        %v709 = vld [vmem:[%s303] sm:$0xff]
        %v710 = vld [vmem:[%s303 + $0x8] sm:$0xff]
        %v711 = vld [vmem:[%s303 + $0x10] sm:$0xff]
        %v712 = vld [vmem:[%s303 + $0x18] sm:$0xff]
        %v713 = vld [vmem:[%s303 + $0x20] sm:$0xff]
        %v714 = vld [vmem:[%s303 + $0x28] sm:$0xff]
        %v715 = vld [vmem:[%s303 + $0x30] sm:$0xff]
        %v716 = vld [vmem:[%s303 + $0x38] sm:$0xff]
        %v717 = vld [vmem:[%s303 + $0x40] sm:$0xff]
        %v718 = vld [vmem:[%s303 + $0x48] sm:$0xff]
        %v719 = vld [vmem:[%s303 + $0x50] sm:$0xff]
        %v720 = vld [vmem:[%s303 + $0x58] sm:$0xff]
        %v721 = vld [vmem:[%s303 + $0x60] sm:$0xff]
        %v722 = vld [vmem:[%s303 + $0x68] sm:$0xff]
        %v723 = vld [vmem:[%s303 + $0x70] sm:$0xff]
        %v724 = vld [vmem:[%s303 + $0x78] sm:$0xff]
        %v725 = vld [vmem:[%s303 + $0x80] sm:$0xff]
        %v726 = vld [vmem:[%s303 + $0x88] sm:$0xff]
        %v727 = vld [vmem:[%s303 + $0x90] sm:$0xff]
        %v728 = vld [vmem:[%s303 + $0x98] sm:$0xff]
        %v729 = vld [vmem:[%s303 + $0xa0] sm:$0xff]
        %v730 = vld [vmem:[%s303 + $0xa8] sm:$0xff]
        %v731 = vld [vmem:[%s303 + $0xb0] sm:$0xff]
        %v732 = vld [vmem:[%s303 + $0xb8] sm:$0xff]
        %v733 = vld [vmem:[%s303 + $0xc0] sm:$0xff]
        %v734 = vld [vmem:[%s303 + $0xc8] sm:$0xff]
        %v735 = vld [vmem:[%s303 + $0xd0] sm:$0xff]
        %v736 = vld [vmem:[%s303 + $0xd8] sm:$0xff]
        %v737 = vld [vmem:[%s303 + $0xe0] sm:$0xff]
        %v738 = vld [vmem:[%s303 + $0xe8] sm:$0xff]
        %v739 = vld [vmem:[%s303 + $0xf0] sm:$0xff]
        %v740 = vld [vmem:[%s303 + $0xf8] sm:$0xff]
        %v741 = vld [vmem:[%s303 + $0x100] sm:$0xff]
        %v742 = vld [vmem:[%s303 + $0x108] sm:$0xff]
        %v743 = vld [vmem:[%s303 + $0x110] sm:$0xff]
        %v744 = vld [vmem:[%s303 + $0x118] sm:$0xff]
        %v745 = vld [vmem:[%s303 + $0x120] sm:$0xff]
        %v746 = vld [vmem:[%s303 + $0x128] sm:$0xff]
        %v747 = vld [vmem:[%s303 + $0x130] sm:$0xff]
        %v748 = vld [vmem:[%s303 + $0x138] sm:$0xff]
        %v749 = vld [vmem:[%s303 + $0x140] sm:$0xff]
        %v750 = vld [vmem:[%s303 + $0x148] sm:$0xff]
        %v751 = vld [vmem:[%s303 + $0x150] sm:$0xff]
        %v752 = vld [vmem:[%s303 + $0x158] sm:$0xff]
        %v753 = vld [vmem:[%s303 + $0x160] sm:$0xff]
        %v754 = vld [vmem:[%s303 + $0x168] sm:$0xff]
        %v755 = vld [vmem:[%s303 + $0x170] sm:$0xff]
        %v756 = vld [vmem:[%s303 + $0x178] sm:$0xff]
        %v757 = vld [vmem:[%s303 + $0x180] sm:$0xff]
        %v758 = vld [vmem:[%s303 + $0x188] sm:$0xff]
        %v759 = vld [vmem:[%s303 + $0x190] sm:$0xff]
        %v760 = vld [vmem:[%s303 + $0x198] sm:$0xff]
        %v761 = vld [vmem:[%s303 + $0x1a0] sm:$0xff]
        %v762 = vld [vmem:[%s303 + $0x1a8] sm:$0xff]
        %v763 = vld [vmem:[%s303 + $0x1b0] sm:$0xff]
        %v764 = vld [vmem:[%s303 + $0x1b8] sm:$0xff]
        %v765 = vld [vmem:[%s303 + $0x1c0] sm:$0xff]
        %v766 = vld [vmem:[%s303 + $0x1c8] sm:$0xff]
        %v767 = vld [vmem:[%s303 + $0x1d0] sm:$0xff]
        %v768 = vld [vmem:[%s303 + $0x1d8] sm:$0xff]
        %v769 = vld [vmem:[%s303 + $0x1e0] sm:$0xff]
        %v770 = vld [vmem:[%s303 + $0x1e8] sm:$0xff]
        %v771 = vld [vmem:[%s303 + $0x1f0] sm:$0xff]
        %v772 = vld [vmem:[%s303 + $0x1f8] sm:$0xff]
        %v773 = vld [vmem:[%s303 + $0x200] sm:$0xff]
        %v774 = vld [vmem:[%s303 + $0x208] sm:$0xff]
        %v775 = vld [vmem:[%s303 + $0x210] sm:$0xff]
        %v776 = vld [vmem:[%s303 + $0x218] sm:$0xff]
        %v777 = vld [vmem:[%s303 + $0x220] sm:$0xff]
        %v778 = vld [vmem:[%s303 + $0x228] sm:$0xff]
        %v779 = vld [vmem:[%s303 + $0x230] sm:$0xff]
        %v780 = vld [vmem:[%s303 + $0x238] sm:$0xff]
        %v781 = vld [vmem:[%s303 + $0x240] sm:$0xff]
        %v782 = vld [vmem:[%s303 + $0x248] sm:$0xff]
        %v783 = vld [vmem:[%s303 + $0x250] sm:$0xff]
        %v784 = vld [vmem:[%s303 + $0x258] sm:$0xff]
        %v785 = vld [vmem:[%s303 + $0x260] sm:$0xff]
        %v786 = vld [vmem:[%s303 + $0x268] sm:$0xff]
        %v787 = vld [vmem:[%s303 + $0x270] sm:$0xff]
        %v788 = vld [vmem:[%s303 + $0x278] sm:$0xff]
        %v789 = vld [vmem:[%s303 + $0x280] sm:$0xff]
        %v790 = vld [vmem:[%s303 + $0x288] sm:$0xff]
        %v791 = vld [vmem:[%s303 + $0x290] sm:$0xff]
        %v792 = vld [vmem:[%s303 + $0x298] sm:$0xff]
        %v793 = vld [vmem:[%s303 + $0x2a0] sm:$0xff]
        %v794 = vld [vmem:[%s303 + $0x2a8] sm:$0xff]
        %v795 = vld [vmem:[%s303 + $0x2b0] sm:$0xff]
        %v796 = vld [vmem:[%s303 + $0x2b8] sm:$0xff]
        %v797 = vld [vmem:[%s303 + $0x2c0] sm:$0xff]
        %v798 = vld [vmem:[%s303 + $0x2c8] sm:$0xff]
        %v799 = vld [vmem:[%s303 + $0x2d0] sm:$0xff]
        %v800 = vld [vmem:[%s303 + $0x2d8] sm:$0xff]
        %v801 = vld [vmem:[%s303 + $0x2e0] sm:$0xff]
        %v802 = vld [vmem:[%s303 + $0x2e8] sm:$0xff]
        %v803 = vld [vmem:[%s303 + $0x2f0] sm:$0xff]
        %v804 = vld [vmem:[%s303 + $0x2f8] sm:$0xff]
        %v805 = vld [vmem:[%s303 + $0x300] sm:$0xff]
        %v806 = vld [vmem:[%s303 + $0x308] sm:$0xff]
        %v807 = vld [vmem:[%s303 + $0x310] sm:$0xff]
        %v808 = vld [vmem:[%s303 + $0x318] sm:$0xff]
        %v809 = vld [vmem:[%s303 + $0x320] sm:$0xff]
        %v810 = vld [vmem:[%s303 + $0x328] sm:$0xff]
        %v811 = vld [vmem:[%s303 + $0x330] sm:$0xff]
        %v812 = vld [vmem:[%s303 + $0x338] sm:$0xff]
        %v813 = vld [vmem:[%s303 + $0x340] sm:$0xff]
        %v814 = vld [vmem:[%s303 + $0x348] sm:$0xff]
        %v815 = vld [vmem:[%s303 + $0x350] sm:$0xff]
        %v816 = vld [vmem:[%s303 + $0x358] sm:$0xff]
        %v817 = vld [vmem:[%s303 + $0x360] sm:$0xff]
        %v818 = vld [vmem:[%s303 + $0x368] sm:$0xff]
        %v819 = vld [vmem:[%s303 + $0x370] sm:$0xff]
        %v820 = vld [vmem:[%s303 + $0x378] sm:$0xff]
        %v821 = vld [vmem:[%s303 + $0x380] sm:$0xff]
        %v822 = vld [vmem:[%s303 + $0x388] sm:$0xff]
        %v823 = vld [vmem:[%s303 + $0x390] sm:$0xff]
        %v824 = vld [vmem:[%s303 + $0x398] sm:$0xff]
        %v825 = vld [vmem:[%s303 + $0x3a0] sm:$0xff]
        %v826 = vld [vmem:[%s303 + $0x3a8] sm:$0xff]
        %v827 = vld [vmem:[%s303 + $0x3b0] sm:$0xff]
        %v828 = vld [vmem:[%s303 + $0x3b8] sm:$0xff]
        %v829 = vld [vmem:[%s303 + $0x3c0] sm:$0xff]
        %v830 = vld [vmem:[%s303 + $0x3c8] sm:$0xff]
        %v831 = vld [vmem:[%s303 + $0x3d0] sm:$0xff]
        %v832 = vld [vmem:[%s303 + $0x3d8] sm:$0xff]
        %v833 = vld [vmem:[%s303 + $0x3e0] sm:$0xff]
        %v834 = vld [vmem:[%s303 + $0x3e8] sm:$0xff]
        %v835 = vld [vmem:[%s303 + $0x3f0] sm:$0xff]
        %v836 = vld [vmem:[%s303 + $0x3f8] sm:$0xff]
        %v837 = vld [vmem:[%s309] sm:$0x1]
        %v839 = vlaneseq
        %v840 = vshrl.u32 %v839, 7
        %v841 = vsub.s32 0, %v840
        %v842 = vrot.slane %v837, %v841
        %v846 = vcombine.high %v707, %v707
        %v848 = vunpack.c.l.s4 1983009808
        %v849 = vunpack.c.0.s8 %v848
        %v850 = vlaneseq
        %v851 = vshrl.u32 %v850, 7
        %v852 = vsub.s32 %v849, %v851
        %v853 = vrot.slane %v707, %v852
        %v855 = vunpack.c.l.s4 1983009808
        %v856 = vunpack.c.0.s8 %v855
        %v857 = vlaneseq
        %v858 = vshrl.u32 %v857, 7
        %v859 = vsub.s32 %v856, %v858
        %v860 = vrot.slane %v846, %v859
        %v861 = vcombine.high %v853, %v853
        %v862 = vcombine.high %v860, %v860
        %v863 = vcombine.high %v708, %v708
        %v865 = vunpack.c.l.s4 1983009808
        %v866 = vunpack.c.0.s8 %v865
        %v867 = vlaneseq
        %v868 = vshrl.u32 %v867, 7
        %v869 = vsub.s32 %v866, %v868
        %v870 = vrot.slane %v708, %v869
        %v872 = vunpack.c.l.s4 1983009808
        %v873 = vunpack.c.0.s8 %v872
        %v874 = vlaneseq
        %v875 = vshrl.u32 %v874, 7
        %v876 = vsub.s32 %v873, %v875
        %v877 = vrot.slane %v863, %v876
        %v878 = vcombine.high %v870, %v870
        %v879 = vcombine.high %v877, %v877
        %888 = vmatprep.subr.mxu0 0.0
        %889 = vmatpush1.msra.mxu0 %v709
        %890 = vmatprep.subr.mxu0 0.0
        %891 = vmatpush1.msra.mxu0 %v710
        %892 = vmatprep.subr.mxu0 0.0
        %893 = vmatpush1.msra.mxu0 %v711
        %894 = vmatprep.subr.mxu0 0.0
        %895 = vmatpush1.msra.mxu0 %v712
        %896 = vmatprep.subr.mxu0 0.0
        %897 = vmatpush1.msra.mxu0 %v713
        %898 = vmatprep.subr.mxu0 0.0
        %899 = vmatpush1.msra.mxu0 %v714
        %900 = vmatprep.subr.mxu0 0.0
        %901 = vmatpush1.msra.mxu0 %v715
        %902 = vmatprep.subr.mxu0 0.0
        %903 = vmatpush1.msra.mxu0 %v716
        %904 = vmatprep.subr.mxu0 0.0
        %905 = vmatpush1.msra.mxu0 %v717
        %906 = vmatprep.subr.mxu0 0.0
        %907 = vmatpush1.msra.mxu0 %v718
        %908 = vmatprep.subr.mxu0 0.0
        %909 = vmatpush1.msra.mxu0 %v719
        %910 = vmatprep.subr.mxu0 0.0
        %911 = vmatpush1.msra.mxu0 %v720
        %912 = vmatprep.subr.mxu0 0.0
        %913 = vmatpush1.msra.mxu0 %v721
        %914 = vmatprep.subr.mxu0 0.0
        %915 = vmatpush1.msra.mxu0 %v722
        %916 = vmatprep.subr.mxu0 0.0
        %917 = vmatpush1.msra.mxu0 %v723
        %918 = vmatprep.subr.mxu0 0.0
        %919 = vmatpush1.msra.mxu0 %v724
        %920 = vmatprep.subr.mxu0 0.0
        %921 = vmatpush1.msra.mxu0 %v725
        %922 = vmatprep.subr.mxu0 0.0
        %923 = vmatpush1.msra.mxu0 %v726
        %924 = vmatprep.subr.mxu0 0.0
        %925 = vmatpush1.msra.mxu0 %v727
        %926 = vmatprep.subr.mxu0 0.0
        %927 = vmatpush1.msra.mxu0 %v728
        %928 = vmatprep.subr.mxu0 0.0
        %929 = vmatpush1.msra.mxu0 %v729
        %930 = vmatprep.subr.mxu0 0.0
        %931 = vmatpush1.msra.mxu0 %v730
        %932 = vmatprep.subr.mxu0 0.0
        %933 = vmatpush1.msra.mxu0 %v731
        %934 = vmatprep.subr.mxu0 0.0
        %935 = vmatpush1.msra.mxu0 %v732
        %936 = vmatprep.subr.mxu0 0.0
        %937 = vmatpush1.msra.mxu0 %v733
        %938 = vmatprep.subr.mxu0 0.0
        %939 = vmatpush1.msra.mxu0 %v734
        %940 = vmatprep.subr.mxu0 0.0
        %941 = vmatpush1.msra.mxu0 %v735
        %942 = vmatprep.subr.mxu0 0.0
        %943 = vmatpush1.msra.mxu0 %v736
        %944 = vmatprep.subr.mxu0 0.0
        %945 = vmatpush1.msra.mxu0 %v737
        %946 = vmatprep.subr.mxu0 0.0
        %947 = vmatpush1.msra.mxu0 %v738
        %948 = vmatprep.subr.mxu0 0.0
        %949 = vmatpush1.msra.mxu0 %v739
        %950 = vmatprep.subr.mxu0 0.0
        %951 = vmatpush1.msra.mxu0 %v740
        %952 = vmatprep.mubr.f32.mxu0 %v861
        %953 = vmatmul.mubr.f32.gmra.mrb[0].mxu0 %v853
        %v954 = vpop.f32.mrb[0].mxu0
        %v955 = vadd.f32 %v842, %v954
        %v956 = vpop.f32.mrb[0].mxu0
        %957 = vdwg.mxu0
        %958 = vmatprep.subr.mxu0 0.0
        %959 = vmatpush1.msra.mxu0 %v741
        %960 = vmatprep.subr.mxu0 0.0
        %961 = vmatpush1.msra.mxu0 %v742
        %962 = vmatprep.subr.mxu0 0.0
        %963 = vmatpush1.msra.mxu0 %v743
        %964 = vmatprep.subr.mxu0 0.0
        %965 = vmatpush1.msra.mxu0 %v744
        %966 = vmatprep.subr.mxu0 0.0
        %967 = vmatpush1.msra.mxu0 %v745
        %968 = vmatprep.subr.mxu0 0.0
        %969 = vmatpush1.msra.mxu0 %v746
        %970 = vmatprep.subr.mxu0 0.0
        %971 = vmatpush1.msra.mxu0 %v747
        %972 = vmatprep.subr.mxu0 0.0
        %973 = vmatpush1.msra.mxu0 %v748
        %974 = vmatprep.subr.mxu0 0.0
        %975 = vmatpush1.msra.mxu0 %v749
        %976 = vmatprep.subr.mxu0 0.0
        %977 = vmatpush1.msra.mxu0 %v750
        %978 = vmatprep.subr.mxu0 0.0
        %979 = vmatpush1.msra.mxu0 %v751
        %980 = vmatprep.subr.mxu0 0.0
        %981 = vmatpush1.msra.mxu0 %v752
        %982 = vmatprep.subr.mxu0 0.0
        %983 = vmatpush1.msra.mxu0 %v753
        %984 = vmatprep.subr.mxu0 0.0
        %985 = vmatpush1.msra.mxu0 %v754
        %986 = vmatprep.subr.mxu0 0.0
        %987 = vmatpush1.msra.mxu0 %v755
        %988 = vmatprep.subr.mxu0 0.0
        %989 = vmatpush1.msra.mxu0 %v756
        %990 = vmatprep.subr.mxu0 0.0
        %991 = vmatpush1.msra.mxu0 %v757
        %992 = vmatprep.subr.mxu0 0.0
        %993 = vmatpush1.msra.mxu0 %v758
        %994 = vmatprep.subr.mxu0 0.0
        %995 = vmatpush1.msra.mxu0 %v759
        %996 = vmatprep.subr.mxu0 0.0
        %997 = vmatpush1.msra.mxu0 %v760
        %998 = vmatprep.subr.mxu0 0.0
        %999 = vmatpush1.msra.mxu0 %v761
        %1000 = vmatprep.subr.mxu0 0.0
        %1001 = vmatpush1.msra.mxu0 %v762
        %1002 = vmatprep.subr.mxu0 0.0
        %1003 = vmatpush1.msra.mxu0 %v763
        %1004 = vmatprep.subr.mxu0 0.0
        %1005 = vmatpush1.msra.mxu0 %v764
        %1006 = vmatprep.subr.mxu0 0.0
        %1007 = vmatpush1.msra.mxu0 %v765
        %1008 = vmatprep.subr.mxu0 0.0
        %1009 = vmatpush1.msra.mxu0 %v766
        %1010 = vmatprep.subr.mxu0 0.0
        %1011 = vmatpush1.msra.mxu0 %v767
        %1012 = vmatprep.subr.mxu0 0.0
        %1013 = vmatpush1.msra.mxu0 %v768
        %1014 = vmatprep.subr.mxu0 0.0
        %1015 = vmatpush1.msra.mxu0 %v769
        %1016 = vmatprep.subr.mxu0 0.0
        %1017 = vmatpush1.msra.mxu0 %v770
        %1018 = vmatprep.subr.mxu0 0.0
        %1019 = vmatpush1.msra.mxu0 %v771
        %1020 = vmatprep.subr.mxu0 0.0
        %1021 = vmatpush1.msra.mxu0 %v772
        %1022 = vmatprep.mubr.f32.mxu0 %v862
        %1023 = vmatmul.mubr.f32.gmra.mrb[0].mxu0 %v860
        %v1024 = vpop.f32.mrb[0].mxu0
        %v1025 = vadd.f32 %v955, %v1024
        %v1026 = vpop.f32.mrb[0].mxu0
        %1027 = vdwg.mxu0
        %1028 = vmatprep.subr.mxu0 0.0
        %1029 = vmatpush1.msra.mxu0 %v773
        %1030 = vmatprep.subr.mxu0 0.0
        %1031 = vmatpush1.msra.mxu0 %v774
        %1032 = vmatprep.subr.mxu0 0.0
        %1033 = vmatpush1.msra.mxu0 %v775
        %1034 = vmatprep.subr.mxu0 0.0
        %1035 = vmatpush1.msra.mxu0 %v776
        %1036 = vmatprep.subr.mxu0 0.0
        %1037 = vmatpush1.msra.mxu0 %v777
        %1038 = vmatprep.subr.mxu0 0.0
        %1039 = vmatpush1.msra.mxu0 %v778
        %1040 = vmatprep.subr.mxu0 0.0
        %1041 = vmatpush1.msra.mxu0 %v779
        %1042 = vmatprep.subr.mxu0 0.0
        %1043 = vmatpush1.msra.mxu0 %v780
        %1044 = vmatprep.subr.mxu0 0.0
        %1045 = vmatpush1.msra.mxu0 %v781
        %1046 = vmatprep.subr.mxu0 0.0
        %1047 = vmatpush1.msra.mxu0 %v782
        %1048 = vmatprep.subr.mxu0 0.0
        %1049 = vmatpush1.msra.mxu0 %v783
        %1050 = vmatprep.subr.mxu0 0.0
        %1051 = vmatpush1.msra.mxu0 %v784
        %1052 = vmatprep.subr.mxu0 0.0
        %1053 = vmatpush1.msra.mxu0 %v785
        %1054 = vmatprep.subr.mxu0 0.0
        %1055 = vmatpush1.msra.mxu0 %v786
        %1056 = vmatprep.subr.mxu0 0.0
        %1057 = vmatpush1.msra.mxu0 %v787
        %1058 = vmatprep.subr.mxu0 0.0
        %1059 = vmatpush1.msra.mxu0 %v788
        %1060 = vmatprep.subr.mxu0 0.0
        %1061 = vmatpush1.msra.mxu0 %v789
        %1062 = vmatprep.subr.mxu0 0.0
        %1063 = vmatpush1.msra.mxu0 %v790
        %1064 = vmatprep.subr.mxu0 0.0
        %1065 = vmatpush1.msra.mxu0 %v791
        %1066 = vmatprep.subr.mxu0 0.0
        %1067 = vmatpush1.msra.mxu0 %v792
        %1068 = vmatprep.subr.mxu0 0.0
        %1069 = vmatpush1.msra.mxu0 %v793
        %1070 = vmatprep.subr.mxu0 0.0
        %1071 = vmatpush1.msra.mxu0 %v794
        %1072 = vmatprep.subr.mxu0 0.0
        %1073 = vmatpush1.msra.mxu0 %v795
        %1074 = vmatprep.subr.mxu0 0.0
        %1075 = vmatpush1.msra.mxu0 %v796
        %1076 = vmatprep.subr.mxu0 0.0
        %1077 = vmatpush1.msra.mxu0 %v797
        %1078 = vmatprep.subr.mxu0 0.0
        %1079 = vmatpush1.msra.mxu0 %v798
        %1080 = vmatprep.subr.mxu0 0.0
        %1081 = vmatpush1.msra.mxu0 %v799
        %1082 = vmatprep.subr.mxu0 0.0
        %1083 = vmatpush1.msra.mxu0 %v800
        %1084 = vmatprep.subr.mxu0 0.0
        %1085 = vmatpush1.msra.mxu0 %v801
        %1086 = vmatprep.subr.mxu0 0.0
        %1087 = vmatpush1.msra.mxu0 %v802
        %1088 = vmatprep.subr.mxu0 0.0
        %1089 = vmatpush1.msra.mxu0 %v803
        %1090 = vmatprep.subr.mxu0 0.0
        %1091 = vmatpush1.msra.mxu0 %v804
        %1092 = vmatprep.mubr.f32.mxu0 %v878
        %1093 = vmatmul.mubr.f32.gmra.mrb[0].mxu0 %v870
        %v1094 = vpop.f32.mrb[0].mxu0
        %v1095 = vadd.f32 %v1025, %v1094
        %v1096 = vpop.f32.mrb[0].mxu0
        %1097 = vdwg.mxu0
        %1098 = vmatprep.subr.mxu0 0.0
        %1099 = vmatpush1.msra.mxu0 %v805
        %1100 = vmatprep.subr.mxu0 0.0
        %1101 = vmatpush1.msra.mxu0 %v806
        %1102 = vmatprep.subr.mxu0 0.0
        %1103 = vmatpush1.msra.mxu0 %v807
        %1104 = vmatprep.subr.mxu0 0.0
        %1105 = vmatpush1.msra.mxu0 %v808
        %1106 = vmatprep.subr.mxu0 0.0
        %1107 = vmatpush1.msra.mxu0 %v809
        %1108 = vmatprep.subr.mxu0 0.0
        %1109 = vmatpush1.msra.mxu0 %v810
        %1110 = vmatprep.subr.mxu0 0.0
        %1111 = vmatpush1.msra.mxu0 %v811
        %1112 = vmatprep.subr.mxu0 0.0
        %1113 = vmatpush1.msra.mxu0 %v812
        %1114 = vmatprep.subr.mxu0 0.0
        %1115 = vmatpush1.msra.mxu0 %v813
        %1116 = vmatprep.subr.mxu0 0.0
        %1117 = vmatpush1.msra.mxu0 %v814
        %1118 = vmatprep.subr.mxu0 0.0
        %1119 = vmatpush1.msra.mxu0 %v815
        %1120 = vmatprep.subr.mxu0 0.0
        %1121 = vmatpush1.msra.mxu0 %v816
        %1122 = vmatprep.subr.mxu0 0.0
        %1123 = vmatpush1.msra.mxu0 %v817
        %1124 = vmatprep.subr.mxu0 0.0
        %1125 = vmatpush1.msra.mxu0 %v818
        %1126 = vmatprep.subr.mxu0 0.0
        %1127 = vmatpush1.msra.mxu0 %v819
        %1128 = vmatprep.subr.mxu0 0.0
        %1129 = vmatpush1.msra.mxu0 %v820
        %1130 = vmatprep.subr.mxu0 0.0
        %1131 = vmatpush1.msra.mxu0 %v821
        %1132 = vmatprep.subr.mxu0 0.0
        %1133 = vmatpush1.msra.mxu0 %v822
        %1134 = vmatprep.subr.mxu0 0.0
        %1135 = vmatpush1.msra.mxu0 %v823
        %1136 = vmatprep.subr.mxu0 0.0
        %1137 = vmatpush1.msra.mxu0 %v824
        %1138 = vmatprep.subr.mxu0 0.0
        %1139 = vmatpush1.msra.mxu0 %v825
        %1140 = vmatprep.subr.mxu0 0.0
        %1141 = vmatpush1.msra.mxu0 %v826
        %1142 = vmatprep.subr.mxu0 0.0
        %1143 = vmatpush1.msra.mxu0 %v827
        %1144 = vmatprep.subr.mxu0 0.0
        %1145 = vmatpush1.msra.mxu0 %v828
        %1146 = vmatprep.subr.mxu0 0.0
        %1147 = vmatpush1.msra.mxu0 %v829
        %1148 = vmatprep.subr.mxu0 0.0
        %1149 = vmatpush1.msra.mxu0 %v830
        %1150 = vmatprep.subr.mxu0 0.0
        %1151 = vmatpush1.msra.mxu0 %v831
        %1152 = vmatprep.subr.mxu0 0.0
        %1153 = vmatpush1.msra.mxu0 %v832
        %1154 = vmatprep.subr.mxu0 0.0
        %1155 = vmatpush1.msra.mxu0 %v833
        %1156 = vmatprep.subr.mxu0 0.0
        %1157 = vmatpush1.msra.mxu0 %v834
        %1158 = vmatprep.subr.mxu0 0.0
        %1159 = vmatpush1.msra.mxu0 %v835
        %1160 = vmatprep.subr.mxu0 0.0
        %1161 = vmatpush1.msra.mxu0 %v836
        %1162 = vmatprep.mubr.f32.mxu0 %v879
        %1163 = vmatmul.mubr.f32.gmra.mrb[0].mxu0 %v877
        %v1164 = vpop.f32.mrb[0].mxu0
        %v1165 = vadd.f32 %v1095, %v1164
        %v1166 = vpop.f32.mrb[0].mxu0
        %1167 = vdwg.mxu0
        %vm1168 = vcmask 517120
        %1169 = vst.msk [vmem:[%s286] sm:$0x3] %vm1168, %v1165
        %s1170 = sand.u32 %s170, 1
        %s1171 = scalar_lea.sflag [#allocation4], %s1170
        %s1172 = sand.u32 %s170, 1
        %s1173 = smul.addr %s1172, 2
        %s1174 = scalar_lea.vmem [#allocation3], %s1173
        // Predicated region
        $region45: #{tpu_custom_call.1} parent=39 // pred_check
          %p1175 = pneg %p180
        $region46: #{tpu_custom_call.1} parent=39 // pred_check_branch
          %1177 = sbr.rel (%p1175) target = $region48
        $region47: #{tpu_custom_call.1} parent=39 // pred_region
          %s1179 = ssub.s32 32, 32
          %1180 = vsyncadd %s1171, %s1179
          %s1181 = sadd.s32 %s24, %s23
          %s1182 = smul.addr %s1181, 32
          %s1183 = scalar_lea.hbm %s5, %s1182
          %s1185 = sshll.u32 %s1174, 4
          %s1186 = int_to_ptr.vmem [resolvable:$true] %s1185
          %1188 = dma.vmem_to_hbm [thread:$0]  %s1186, 32, %s1183, %s1171
        $region48: #{tpu_custom_call.1} parent=39 // pred_fallthru
          _
      $region40: #{tpu_custom_call.1} parent=5 // pred_fallthru
        _
      %p1189 = scmp.le.s32.totalorder 2, %s14
      // Predicated region
      $region49: #{tpu_custom_call.1} parent=5 // pred_check
        %p1190 = pneg %p1189
      $region50: #{tpu_custom_call.1} parent=5 // pred_check_branch
        %1192 = sbr.rel (%p1190) target = $region52
      $region51: #{tpu_custom_call.1} parent=5 // pred_region
        %s1193 = ssub.s32 %s14, 2
        // Predicated region
        $region53: #{tpu_custom_call.1} parent=51 // pred_check
          %p1194 = pneg %p186
        $region54: #{tpu_custom_call.1} parent=51 // pred_check_branch
          %1196 = sbr.rel (%p1194) target = $region56
        $region55: #{tpu_custom_call.1} parent=51 // pred_region
          %s1197 = sand.u32 %s171, 1
          %s1198 = scalar_lea.sflag [#allocation4], %s1197
          %s1199 = sand.u32 %s171, 1
          %s1200 = smul.addr %s1199, 2
          %s1201 = scalar_lea.vmem [#allocation3], %s1200
          %1202 = dma.done %s1198, 32
        $region56: #{tpu_custom_call.1} parent=51 // pred_fallthru
          _
      $region52: #{tpu_custom_call.1} parent=5 // pred_fallthru
        _
    $region6: #{tpu_custom_call.1} parent=1 // loop_footer
      %s18 = sadd.s32 1, %s14
    $region7: #{tpu_custom_call.1} parent=1 // loop_footer_branch
      %13 = sbr.rel target = $region3
    $region8: #{tpu_custom_call.1} parent=1 // loop_exit
      _
    %1203 = vsyncpa [#allocation4], 1
    %s1204 = scalar_lea.sflag [#allocation4], 1
    %1205 = vsyncpa %s1204, 1

</llo_original>
